<compile_context>
chip_gen: v7x
topology: tpu7x:2x2x1
jax: 0.10.0
libtpu: 0.0.40
codegen_flags: <defaults>
</compile_context>

<pallas_src>
import functools

import jax
import jax.numpy as jnp
from jax.experimental import pallas as pl
from jax.experimental.pallas import tpu as pltpu


def _round_up(n, m):
    return ((n + m - 1) // m) * m


@functools.lru_cache(maxsize=1)
def _vmem_capacity_bytes():
    """Physical VMEM per core; falls back to a conservative v7x-sized value."""
    try:
        info = pltpu.get_tpu_info()
        cap = getattr(info, "vmem_capacity_bytes", None)
        if cap:
            return int(cap)
    except Exception:
        pass
    return 64 << 20


def _subnet_kernel(x_ref, w1_ref, b1_ref, w2_ref, b2_ref, o_ref):
    # fc1 on the MXU; bias add + ReLU on the f32 accumulator (VPU).
    h = jnp.dot(x_ref[...], w1_ref[...], preferred_element_type=jnp.float32)
    h = jnp.maximum(h + b1_ref[...], 0.0)          # (1, H) broadcasts over TB
    # fc2 on the MXU; f32 accumulate, cast to output dtype only at the end.
    y = jnp.dot(h.astype(w2_ref.dtype), w2_ref[...],
                preferred_element_type=jnp.float32)
    o_ref[...] = (y + b2_ref[...]).astype(o_ref.dtype)
    # TODO(synk): for very large `hidden` on v7x, chunk the hidden dim with a
    # fori_loop + f32 VMEM accumulator so the live intermediate stays small.


def _subnet_forward_impl(x, w1, b1, w2, b2, *, block_batch=512,
                         param_dtype=None):
    out_dtype = x.dtype
    B, dims_in = x.shape
    hidden = w1.shape[1]
    dims_out = w2.shape[1]

    mxu_dtype = jnp.dtype(param_dtype) if param_dtype is not None else x.dtype
    mxu_bytes = jnp.dtype(mxu_dtype).itemsize
    out_bytes = jnp.dtype(out_dtype).itemsize

    # ---- VMEM-layout (padded) sizes: estimate only, HBM stays unpadded -----
    din_v = _round_up(dims_in, 128)
    h_v = _round_up(hidden, 128)
    dout_v = _round_up(dims_out, 128)
    sub = 16 if mxu_bytes == 2 else 8

    def _vmem_estimate(tb_):
        # w/b are single-buffered (pl.Buffered(1)); x/out double-buffered.
        weights = (_round_up(dims_in, sub) * h_v
                   + _round_up(hidden, sub) * dout_v) * mxu_bytes
        biases = (h_v + dout_v) * 4
        acts = 2 * tb_ * (din_v * mxu_bytes + dout_v * out_bytes)
        interm = tb_ * h_v * 4
        if mxu_dtype != jnp.float32:
            interm += tb_ * h_v * mxu_bytes
        return weights + biases + acts + interm

    # ---- per-generation VMEM budget -----------------------------------------
    vmem_cap = _vmem_capacity_bytes()
    if vmem_cap >= (100 << 20):        # v5e / v6e: 128 MiB physical
        vmem_budget = 100 << 20
        vmem_limit_cap = 110 << 20
    else:                              # v7x (64 MiB) or unknown: stay safe
        vmem_budget = 48 << 20
        vmem_limit_cap = 56 << 20      # headroom for Mosaic internal scratch

    # ---- batch tile sizing ---------------------------------------------------
    tb = min(_round_up(block_batch, sub), _round_up(B, sub))
    if B >= 256:
        # Guarantee >= 2 grid steps so the batch axis can shard across v7x's
        # two TensorCores (one extra ~0.35 us step elsewhere is noise).
        tb = min(tb, _round_up(pl.cdiv(B, 2), sub))
    while _vmem_estimate(tb) > vmem_budget and tb > sub:
        tb = max(sub, _round_up(tb // 2, sub))

    b_pad = _round_up(B, tb)
    grid = (b_pad // tb,)

    vmem_limit = int(min(max(int(_vmem_estimate(tb) * 1.5) + (4 << 20),
                             16 << 20),
                         vmem_limit_cap))

    # ---- operand prep (all no-ops skipped; cheap under jit) ------------------
    w1_in = w1 if w1.dtype == mxu_dtype else w1.astype(mxu_dtype)
    w2_in = w2 if w2.dtype == mxu_dtype else w2.astype(mxu_dtype)
    b1_in = b1.reshape(1, hidden).astype(jnp.float32)
    b2_in = b2.reshape(1, dims_out).astype(jnp.float32)

    if b_pad != B:
        x_in = jnp.zeros((b_pad, dims_in), mxu_dtype).at[:B].set(
            x.astype(mxu_dtype))
    elif x.dtype != mxu_dtype:
        x_in = x.astype(mxu_dtype)
    else:
        x_in = x

    resident = dict(pipeline_mode=pl.Buffered(1))   # constant index_map blocks

    out = pl.pallas_call(
        _subnet_kernel,
        out_shape=jax.ShapeDtypeStruct((b_pad, dims_out), out_dtype),
        grid_spec=pl.GridSpec(
            grid=grid,
            in_specs=[
                pl.BlockSpec((tb, dims_in), lambda i: (i, 0)),              # x
                pl.BlockSpec((dims_in, hidden), lambda i: (0, 0), **resident),
                pl.BlockSpec((1, hidden), lambda i: (0, 0), **resident),
                pl.BlockSpec((hidden, dims_out), lambda i: (0, 0), **resident),
                pl.BlockSpec((1, dims_out), lambda i: (0, 0), **resident),
            ],
            out_specs=pl.BlockSpec((tb, dims_out), lambda i: (i, 0)),
        ),
        compiler_params=pltpu.CompilerParams(
            dimension_semantics=("parallel",),   # shard batch across TCs (v7x)
            vmem_limit_bytes=vmem_limit),
    )(x_in, w1_in, b1_in, w2_in, b2_in)

    if b_pad != B:
        out = out[:B]
    return out
    # TODO(synk): at production sizes fuse this Subnet into the surrounding
    # INN coupling block (or stack subnets on an extra grid axis) to amortize
    # per-call overhead; a standalone call at toy shapes is dispatch-bound.


# Single-launch forward: pad/cast prep, kernel and slice fuse under one jit.
subnet_forward = jax.jit(_subnet_forward_impl,
                         static_argnames=("block_batch", "param_dtype"))


def prepare_subnet_params(w1, b1, w2, b2, param_dtype):
    """Cast weights to the MXU dtype once, outside the hot path."""
    return (w1.astype(param_dtype), b1, w2.astype(param_dtype), b2)


def init_subnet_params(key, dims_in, dims_out, hidden, dtype=jnp.float32):
    """Parameter init mirroring the PyTorch module's __init__.

    fc1: default nn.Linear-style uniform init (deterministic via PRNGKey).
    fc2: weight and bias filled with 0.0, exactly as in Subnet.__init__.
    Weights are stored already transposed to (in, out) for the kernel.
    """
    k1, k2 = jax.random.split(key)
    bound1 = 1.0 / jnp.sqrt(dims_in)
    w1 = jax.random.uniform(k1, (dims_in, hidden), dtype,
                            minval=-bound1, maxval=bound1)
    b1 = jax.random.uniform(k2, (hidden,), dtype,
                            minval=-bound1, maxval=bound1)
    w2 = jnp.zeros((hidden, dims_out), dtype)   # fc2.weight.data.fill_(0.0)
    b2 = jnp.zeros((dims_out,), dtype)          # fc2.bias.data.fill_(0.0)
    return w1, b1, w2, b2


def _ref(x, w1, b1, w2, b2):
    return jnp.maximum(x @ w1 + b1, 0.0) @ w2 + b2


if __name__ == "__main__":
    dims_in, dims_out, hidden = 16, 16, 32
    batch = 8

    key = jax.random.PRNGKey(0)
    kx, kp, kw1, kb1, kw2, kb2, kx2, kx3 = jax.random.split(key, 8)
    x = jax.random.normal(kx, (batch, dims_in), jnp.float32)

    # 1) Module-faithful init (fc2 zero-filled): output must match reference.
    w1, b1, w2, b2 = init_subnet_params(kp, dims_in, dims_out, hidden)
    out = subnet_forward(x, w1, b1, w2, b2)
    jax.block_until_ready(out)
    assert out.shape == (batch, dims_out)
    assert jnp.allclose(out, _ref(x, w1, b1, w2, b2), atol=1e-5)

    # 2) Random (non-zero) params: checks both matmuls, bias adds, ReLU.
    w1r = jax.random.normal(kw1, (dims_in, hidden), jnp.float32) * 0.2
    b1r = jax.random.normal(kb1, (hidden,), jnp.float32) * 0.1
    w2r = jax.random.normal(kw2, (hidden, dims_out), jnp.float32) * 0.2
    b2r = jax.random.normal(kb2, (dims_out,), jnp.float32) * 0.1
    out_r = subnet_forward(x, w1r, b1r, w2r, b2r)
    jax.block_until_ready(out_r)
    assert jnp.allclose(out_r, _ref(x, w1r, b1r, w2r, b2r), atol=1e-5)

    # 3) Ragged batch with a small tile so the grid has >1 step: exercises
    #    batch padding + multi-step pipelining + output slicing.
    x2 = jax.random.normal(kx2, (10, dims_in), jnp.float32)
    out_2 = subnet_forward(x2, w1r, b1r, w2r, b2r, block_batch=8)
    jax.block_until_ready(out_2)
    assert out_2.shape == (10, dims_out)
    assert jnp.allclose(out_2, _ref(x2, w1r, b1r, w2r, b2r), atol=1e-5)

    # 4) bf16 weight/activation path (params pre-cast once) with f32 accumulate.
    w1b, b1b, w2b, b2b = prepare_subnet_params(w1r, b1r, w2r, b2r, jnp.bfloat16)
    out_bf16 = subnet_forward(x, w1b, b1b, w2b, b2b, param_dtype=jnp.bfloat16)
    jax.block_until_ready(out_bf16)
    assert jnp.allclose(out_bf16, _ref(x, w1r, b1r, w2r, b2r),
                        atol=5e-2, rtol=5e-2)

    # 5) Larger ragged batch: exercises the >=2-grid-step cap (megacore path)
    #    and the padded-batch / sliced-output path in one go.
    x3 = jax.random.normal(kx3, (300, dims_in), jnp.float32)
    out_3 = subnet_forward(x3, w1r, b1r, w2r, b2r)
    jax.block_until_ready(out_3)
    assert out_3.shape == (300, dims_out)
    assert jnp.allclose(out_3, _ref(x3, w1r, b1r, w2r, b2r), atol=1e-5)

    print("KERNEL_OK")
</pallas_src>

<mosaic_0001>
module attributes {stable_mosaic.version = 11 : i64} {
  func.func @_subnet_kernel(%arg0: i32, %arg1: memref<8x16xf32, #tpu.memory_space<vmem>>, %arg2: memref<16x32xf32, #tpu.memory_space<vmem>>, %arg3: memref<1x32xf32, #tpu.memory_space<vmem>>, %arg4: memref<32x16xf32, #tpu.memory_space<vmem>>, %arg5: memref<1x16xf32, #tpu.memory_space<vmem>>, %arg6: memref<8x16xf32, #tpu.memory_space<vmem>>) attributes {dimension_semantics = [#tpu.dimension_semantics<parallel>], iteration_bounds = array<i64: 1>, scalar_prefetch = 0 : i64, scratch_operands = 0 : i64, tpu.core_type = #tpu.core_type<tc>, window_params = [{transform_indices = @transform_0, window_bounds = array<i64: 8, 16>}, {pipeline_mode = #tpu.pipeline_mode<synchronous>, transform_indices = @transform_1, window_bounds = array<i64: 16, 32>}, {pipeline_mode = #tpu.pipeline_mode<synchronous>, transform_indices = @transform_2, window_bounds = array<i64: 1, 32>}, {pipeline_mode = #tpu.pipeline_mode<synchronous>, transform_indices = @transform_3, window_bounds = array<i64: 32, 16>}, {pipeline_mode = #tpu.pipeline_mode<synchronous>, transform_indices = @transform_4, window_bounds = array<i64: 1, 16>}, {transform_indices = @transform_5, window_bounds = array<i64: 8, 16>}]} {
    %c0 = arith.constant 0 : index
    %c0_0 = arith.constant 0 : index
    %0 = vector.load %arg1[%c0, %c0_0] : memref<8x16xf32, #tpu.memory_space<vmem>>, vector<8x16xf32>
    %c0_1 = arith.constant 0 : index
    %c0_2 = arith.constant 0 : index
    %1 = vector.load %arg2[%c0_1, %c0_2] : memref<16x32xf32, #tpu.memory_space<vmem>>, vector<16x32xf32>
    %cst = arith.constant dense<0.000000e+00> : vector<8x32xf32>
    %2 = tpu.matmul %0, %1, %cst {dimension_numbers = #tpu.dot_dimension_numbers<[1], [0], [0], [1], [0, 0, 1, 1], [], []>} : vector<8x16xf32>, vector<16x32xf32>, vector<8x32xf32> -> vector<8x32xf32>
    %c0_3 = arith.constant 0 : index
    %c0_4 = arith.constant 0 : index
    %3 = vector.load %arg3[%c0_3, %c0_4] : memref<1x32xf32, #tpu.memory_space<vmem>>, vector<1x32xf32>
    %4 = vector.broadcast %3 : vector<1x32xf32> to vector<8x32xf32>
    %5 = arith.addf %2, %4 : vector<8x32xf32>
    %cst_5 = arith.constant 0.000000e+00 : f32
    %6 = vector.broadcast %cst_5 : f32 to vector<8x32xf32>
    %7 = arith.maximumf %5, %6 : vector<8x32xf32>
    %c0_6 = arith.constant 0 : index
    %c0_7 = arith.constant 0 : index
    %8 = vector.load %arg4[%c0_6, %c0_7] : memref<32x16xf32, #tpu.memory_space<vmem>>, vector<32x16xf32>
    %cst_8 = arith.constant dense<0.000000e+00> : vector<8x16xf32>
    %9 = tpu.matmul %7, %8, %cst_8 {dimension_numbers = #tpu.dot_dimension_numbers<[1], [0], [0], [1], [0, 0, 1, 1], [], []>} : vector<8x32xf32>, vector<32x16xf32>, vector<8x16xf32> -> vector<8x16xf32>
    %c0_9 = arith.constant 0 : index
    %c0_10 = arith.constant 0 : index
    %10 = vector.load %arg5[%c0_9, %c0_10] : memref<1x16xf32, #tpu.memory_space<vmem>>, vector<1x16xf32>
    %11 = vector.broadcast %10 : vector<1x16xf32> to vector<8x16xf32>
    %12 = arith.addf %9, %11 : vector<8x16xf32>
    %c0_11 = arith.constant 0 : index
    %c0_12 = arith.constant 0 : index
    %13 = vector.load %arg6[%c0_11, %c0_12] : memref<8x16xf32, #tpu.memory_space<vmem>>, vector<8x16xf32>
    tpu.vector_store %arg6[%c0_11, %c0_12], %12 {strides = array<i32>} : memref<8x16xf32, #tpu.memory_space<vmem>>, vector<8x16xf32>,
    return
  }
  func.func @transform_0(%arg0: i32) -> (i32, i32) {
    %c0_i32 = arith.constant 0 : i32
    %c0_i32_0 = arith.constant 0 : i32
    return %arg0, %c0_i32 : i32, i32
  }
  func.func @transform_1(%arg0: i32) -> (i32, i32) {
    %c0_i32 = arith.constant 0 : i32
    %c0_i32_0 = arith.constant 0 : i32
    %c0_i32_1 = arith.constant 0 : i32
    return %c0_i32, %c0_i32_0 : i32, i32
  }
  func.func @transform_2(%arg0: i32) -> (i32, i32) {
    %c0_i32 = arith.constant 0 : i32
    %c0_i32_0 = arith.constant 0 : i32
    %c0_i32_1 = arith.constant 0 : i32
    return %c0_i32, %c0_i32_0 : i32, i32
  }
  func.func @transform_3(%arg0: i32) -> (i32, i32) {
    %c0_i32 = arith.constant 0 : i32
    %c0_i32_0 = arith.constant 0 : i32
    %c0_i32_1 = arith.constant 0 : i32
    return %c0_i32, %c0_i32_0 : i32, i32
  }
  func.func @transform_4(%arg0: i32) -> (i32, i32) {
    %c0_i32 = arith.constant 0 : i32
    %c0_i32_0 = arith.constant 0 : i32
    %c0_i32_1 = arith.constant 0 : i32
    return %c0_i32, %c0_i32_0 : i32, i32
  }
  func.func @transform_5(%arg0: i32) -> (i32, i32) {
    %c0_i32 = arith.constant 0 : i32
    %c0_i32_0 = arith.constant 0 : i32
    return %arg0, %c0_i32 : i32, i32
  }
}

</mosaic_0001>

<llo_original>
// kernel: _subnet_forward_impl.1
$region0: #{_subnet_forward_impl.1}
  #allocation0 [shape = 'u32[]', space=smem, size = 0x4, offset = 0x4, fixed_abs, tag = 'smem constant byte address 0x4 - core index']
  #allocation1 [shape = 'u32[144,128]{1,0:T(1,128)}', space=vmem, size = 0x12000, scoped, tag = 'internal scratch']
  %s0 = inlined_call_operand.vmem [shape: f32[8,16], index: 0, kind: input, shape index: {}]
  %s1 = inlined_call_operand.vmem [shape: f32[16,32], index: 1, kind: input, shape index: {}]
  %s2 = inlined_call_operand.vmem [shape: f32[1,32], index: 2, kind: input, shape index: {}]
  %s3 = inlined_call_operand.vmem [shape: f32[32,16], index: 3, kind: input, shape index: {}]
  %s4 = inlined_call_operand.vmem [shape: f32[1,16], index: 4, kind: input, shape index: {}]
  %s5 = inlined_call_operand.hbm [shape: f32[8,16], index: 5, kind: output, shape index: {}]
  %s6 = sld [smem:[#allocation0]]
  $region30: #{_subnet_forward_impl.1} parent=0
    _
  %s8 = ssub.s32 1, %s6
  %s9 = scalar_select 0, %s8, %s6
  $region1: #{_subnet_forward_impl.1} parent=0
    #allocation2 [shape = 'u8[4096]{0}', space=vmem, size = 0x1000, scoped, tag = 'output window, operand 0, single buffered']
    #allocation3 [shape = 's32[1]{0}', space=sflag, size = 0x4, scoped, tag = 'scoped memory for _subnet_forward_impl.1']
    %10 = vsyncpa [#allocation3], 0
    // Predicated region
    $region2: #{_subnet_forward_impl.1} parent=1 // pred_check
      _
    $region3: #{_subnet_forward_impl.1} parent=1 // pred_check_branch
      %12 = sbr.rel (0) target = $region5
    $region4: #{_subnet_forward_impl.1} parent=1 // pred_region
      _
    $region5: #{_subnet_forward_impl.1} parent=1 // pred_fallthru
      _
    // Predicated region
    $region6: #{_subnet_forward_impl.1} parent=1 // pred_check
      _
    $region7: #{_subnet_forward_impl.1} parent=1 // pred_check_branch
      %14 = sbr.rel (0) target = $region9
    $region8: #{_subnet_forward_impl.1} parent=1 // pred_region
      _
    $region9: #{_subnet_forward_impl.1} parent=1 // pred_fallthru
      _
    // Predicated region
    $region10: #{_subnet_forward_impl.1} parent=1 // pred_check
      _
    $region11: #{_subnet_forward_impl.1} parent=1 // pred_check_branch
      %16 = sbr.rel (0) target = $region13
    $region12: #{_subnet_forward_impl.1} parent=1 // pred_region
      _
    $region13: #{_subnet_forward_impl.1} parent=1 // pred_fallthru
      _
    // Predicated region
    $region14: #{_subnet_forward_impl.1} parent=1 // pred_check
      _
    $region15: #{_subnet_forward_impl.1} parent=1 // pred_check_branch
      %18 = sbr.rel (0) target = $region17
    $region16: #{_subnet_forward_impl.1} parent=1 // pred_region
      _
    $region17: #{_subnet_forward_impl.1} parent=1 // pred_fallthru
      _
    // Predicated region
    $region18: #{_subnet_forward_impl.1} parent=1 // pred_check
      _
    $region19: #{_subnet_forward_impl.1} parent=1 // pred_check_branch
      %20 = sbr.rel (0) target = $region21
    $region20: #{_subnet_forward_impl.1} parent=1 // pred_region
      _
    $region21: #{_subnet_forward_impl.1} parent=1 // pred_fallthru
      _
    %v21 = vld [vmem:[%s0] sm:$0xff]
    %v22 = vld [vmem:[%s1] sm:$0xff]
    %v23 = vld [vmem:[%s1 + $0x8] sm:$0xff]
    %v24 = vld [vmem:[%s2] sm:$0x1]
    %v26 = vlaneseq
    %v27 = vshrl.u32 %v26, 7
    %v28 = vsub.s32 0, %v27
    %v29 = vrot.slane %v24, %v28
    %vm31 = vcmask 130048
    %v33 = vsel %vm31, %v21, 0
    %35 = vmatprep.subr.mxu0 0.0
    %36 = vmatpush1.msra.mxu0 %v22
    %37 = vmatprep.subr.mxu0 0.0
    %38 = vmatpush1.msra.mxu0 %v23
    %39 = vmatprep.subr.mxu0 0.0
    %40 = vmatpush1.msra.mxu0 0.0
    %41 = vmatprep.subr.mxu0 0.0
    %42 = vmatpush1.msra.mxu0 0.0
    %43 = vmatprep.subr.mxu0 0.0
    %44 = vmatpush1.msra.mxu0 0.0
    %45 = vmatprep.subr.mxu0 0.0
    %46 = vmatpush1.msra.mxu0 0.0
    %47 = vmatprep.subr.mxu0 0.0
    %48 = vmatpush1.msra.mxu0 0.0
    %49 = vmatprep.subr.mxu0 0.0
    %50 = vmatpush1.msra.mxu0 0.0
    %51 = vmatprep.subr.mxu0 0.0
    %52 = vmatpush1.msra.mxu0 0.0
    %53 = vmatprep.subr.mxu0 0.0
    %54 = vmatpush1.msra.mxu0 0.0
    %55 = vmatprep.subr.mxu0 0.0
    %56 = vmatpush1.msra.mxu0 0.0
    %57 = vmatprep.subr.mxu0 0.0
    %58 = vmatpush1.msra.mxu0 0.0
    %59 = vmatprep.subr.mxu0 0.0
    %60 = vmatpush1.msra.mxu0 0.0
    %61 = vmatprep.subr.mxu0 0.0
    %62 = vmatpush1.msra.mxu0 0.0
    %63 = vmatprep.subr.mxu0 0.0
    %64 = vmatpush1.msra.mxu0 0.0
    %65 = vmatprep.subr.mxu0 0.0
    %66 = vmatpush1.msra.mxu0 0.0
    %67 = vmatprep.subr.mxu0 0.0
    %68 = vmatpush1.msra.mxu0 0.0
    %69 = vmatprep.subr.mxu0 0.0
    %70 = vmatpush1.msra.mxu0 0.0
    %71 = vmatprep.subr.mxu0 0.0
    %72 = vmatpush1.msra.mxu0 0.0
    %73 = vmatprep.subr.mxu0 0.0
    %74 = vmatpush1.msra.mxu0 0.0
    %75 = vmatprep.subr.mxu0 0.0
    %76 = vmatpush1.msra.mxu0 0.0
    %77 = vmatprep.subr.mxu0 0.0
    %78 = vmatpush1.msra.mxu0 0.0
    %79 = vmatprep.subr.mxu0 0.0
    %80 = vmatpush1.msra.mxu0 0.0
    %81 = vmatprep.subr.mxu0 0.0
    %82 = vmatpush1.msra.mxu0 0.0
    %83 = vmatprep.subr.mxu0 0.0
    %84 = vmatpush1.msra.mxu0 0.0
    %85 = vmatprep.subr.mxu0 0.0
    %86 = vmatpush1.msra.mxu0 0.0
    %87 = vmatprep.subr.mxu0 0.0
    %88 = vmatpush1.msra.mxu0 0.0
    %89 = vmatprep.subr.mxu0 0.0
    %90 = vmatpush1.msra.mxu0 0.0
    %91 = vmatprep.subr.mxu0 0.0
    %92 = vmatpush1.msra.mxu0 0.0
    %93 = vmatprep.subr.mxu0 0.0
    %94 = vmatpush1.msra.mxu0 0.0
    %95 = vmatprep.subr.mxu0 0.0
    %96 = vmatpush1.msra.mxu0 0.0
    %97 = vmatprep.subr.mxu0 0.0
    %98 = vmatpush1.msra.mxu0 0.0
    %99 = vmatprep.mubr.f32.mxu0 0.0
    %100 = vmatmul.mubr.f32.gmra.mrb[0].mxu0 %v33
    %v101 = vpop.f32.mrb[0].mxu0
    %v102 = vadd.f32 %v29, %v101
    %v103 = vpop.f32.mrb[0].mxu0
    %104 = vdwg.mxu0
    %v105 = vmax.f32 %v102, 0.0
    %v106 = vld [vmem:[%s3] sm:$0xff]
    %v107 = vld [vmem:[%s3 + $0x8] sm:$0xff]
    %v108 = vld [vmem:[%s3 + $0x10] sm:$0xff]
    %v109 = vld [vmem:[%s3 + $0x18] sm:$0xff]
    %v110 = vld [vmem:[%s4] sm:$0x1]
    %v112 = vlaneseq
    %v113 = vshrl.u32 %v112, 7
    %v114 = vsub.s32 0, %v113
    %v115 = vrot.slane %v110, %v114
    %vm117 = vcmask 261120
    %v119 = vsel %vm117, %v105, 0
    %121 = vmatprep.subr.mxu0 0.0
    %122 = vmatpush1.msra.mxu0 %v106
    %123 = vmatprep.subr.mxu0 0.0
    %124 = vmatpush1.msra.mxu0 %v107
    %125 = vmatprep.subr.mxu0 0.0
    %126 = vmatpush1.msra.mxu0 %v108
    %127 = vmatprep.subr.mxu0 0.0
    %128 = vmatpush1.msra.mxu0 %v109
    %129 = vmatprep.subr.mxu0 0.0
    %130 = vmatpush1.msra.mxu0 0.0
    %131 = vmatprep.subr.mxu0 0.0
    %132 = vmatpush1.msra.mxu0 0.0
    %133 = vmatprep.subr.mxu0 0.0
    %134 = vmatpush1.msra.mxu0 0.0
    %135 = vmatprep.subr.mxu0 0.0
    %136 = vmatpush1.msra.mxu0 0.0
    %137 = vmatprep.subr.mxu0 0.0
    %138 = vmatpush1.msra.mxu0 0.0
    %139 = vmatprep.subr.mxu0 0.0
    %140 = vmatpush1.msra.mxu0 0.0
    %141 = vmatprep.subr.mxu0 0.0
    %142 = vmatpush1.msra.mxu0 0.0
    %143 = vmatprep.subr.mxu0 0.0
    %144 = vmatpush1.msra.mxu0 0.0
    %145 = vmatprep.subr.mxu0 0.0
    %146 = vmatpush1.msra.mxu0 0.0
    %147 = vmatprep.subr.mxu0 0.0
    %148 = vmatpush1.msra.mxu0 0.0
    %149 = vmatprep.subr.mxu0 0.0
    %150 = vmatpush1.msra.mxu0 0.0
    %151 = vmatprep.subr.mxu0 0.0
    %152 = vmatpush1.msra.mxu0 0.0
    %153 = vmatprep.subr.mxu0 0.0
    %154 = vmatpush1.msra.mxu0 0.0
    %155 = vmatprep.subr.mxu0 0.0
    %156 = vmatpush1.msra.mxu0 0.0
    %157 = vmatprep.subr.mxu0 0.0
    %158 = vmatpush1.msra.mxu0 0.0
    %159 = vmatprep.subr.mxu0 0.0
    %160 = vmatpush1.msra.mxu0 0.0
    %161 = vmatprep.subr.mxu0 0.0
    %162 = vmatpush1.msra.mxu0 0.0
    %163 = vmatprep.subr.mxu0 0.0
    %164 = vmatpush1.msra.mxu0 0.0
    %165 = vmatprep.subr.mxu0 0.0
    %166 = vmatpush1.msra.mxu0 0.0
    %167 = vmatprep.subr.mxu0 0.0
    %168 = vmatpush1.msra.mxu0 0.0
    %169 = vmatprep.subr.mxu0 0.0
    %170 = vmatpush1.msra.mxu0 0.0
    %171 = vmatprep.subr.mxu0 0.0
    %172 = vmatpush1.msra.mxu0 0.0
    %173 = vmatprep.subr.mxu0 0.0
    %174 = vmatpush1.msra.mxu0 0.0
    %175 = vmatprep.subr.mxu0 0.0
    %176 = vmatpush1.msra.mxu0 0.0
    %177 = vmatprep.subr.mxu0 0.0
    %178 = vmatpush1.msra.mxu0 0.0
    %179 = vmatprep.subr.mxu0 0.0
    %180 = vmatpush1.msra.mxu0 0.0
    %181 = vmatprep.subr.mxu0 0.0
    %182 = vmatpush1.msra.mxu0 0.0
    %183 = vmatprep.subr.mxu0 0.0
    %184 = vmatpush1.msra.mxu0 0.0
    %185 = vmatprep.mubr.f32.mxu0 0.0
    %186 = vmatmul.mubr.f32.gmra.mrb[0].mxu0 %v119
    %v187 = vpop.f32.mrb[0].mxu0
    %v188 = vadd.f32 %v115, %v187
    %v189 = vpop.f32.mrb[0].mxu0
    %190 = vdwg.mxu0
    %191 = vst.msk [vmem:[#allocation2] sm:$0xff] %vm31, %v188
    // Predicated region
    $region22: #{_subnet_forward_impl.1} parent=1 // pred_check
      _
    $region23: #{_subnet_forward_impl.1} parent=1 // pred_check_branch
      %193 = sbr.rel (0) target = $region25
    $region24: #{_subnet_forward_impl.1} parent=1 // pred_region
      %s195 = ssub.s32 128, 128
      %196 = vsyncadd [#allocation3], %s195
      %s198 = sshll.u32 [#allocation2], 4
      %s199 = int_to_ptr.vmem [resolvable:$true] %s198
      %201 = dma.vmem_to_hbm [thread:$0]  %s199, 128, %s5, [#allocation3]
    $region25: #{_subnet_forward_impl.1} parent=1 // pred_fallthru
      _
    // Predicated region
    $region26: #{_subnet_forward_impl.1} parent=1 // pred_check
      _
    $region27: #{_subnet_forward_impl.1} parent=1 // pred_check_branch
      %203 = sbr.rel (0) target = $region29
    $region28: #{_subnet_forward_impl.1} parent=1 // pred_region
      %204 = dma.done [#allocation3], 128
    $region29: #{_subnet_forward_impl.1} parent=1 // pred_fallthru
      _
    %205 = vsyncpa [#allocation3], 1

</llo_original>
